<compile_context>
chip_gen: v7x
topology: tpu7x:2x2x1
jax: 0.10.0
libtpu: 0.0.40
codegen_flags: <defaults>
</compile_context>

<pallas_src>
import jax
import jax.numpy as jnp
from jax.experimental import pallas as pl
from jax.experimental.pallas import tpu as pltpu

EPS = 1e-8


def _round_up(x, m):
    return ((x + m - 1) // m) * m


def _make_row_sum_kernel(rows, hw, row_tile, lane_tile):
    """Kernel closure over the static problem/tile sizes (for edge masking)."""
    need_row_mask = (rows % row_tile) != 0
    need_lane_mask = (hw % lane_tile) != 0

    def kernel(x_ref, t_ref, rowsum_ref):
        i = pl.program_id(0)
        j = pl.program_id(1)

        @pl.when(j == 0)
        def _():
            rowsum_ref[...] = jnp.zeros_like(rowsum_ref)

        x = x_ref[...].astype(jnp.float32)
        t = t_ref[...].astype(jnp.float32)
        log_pred = jnp.log(jnp.maximum(x, jnp.float32(EPS)))
        contrib = t * log_pred

        # Mask ragged edge blocks BEFORE the reduce (out-of-range VMEM lanes /
        # rows hold garbage from the clipped DMA).  Only emitted when the
        # static shape actually needs it.
        if need_row_mask or need_lane_mask:
            mask = None
            if need_lane_mask:
                lane_idx = jax.lax.broadcasted_iota(
                    jnp.int32, (row_tile, lane_tile), 1)
                mask = (lane_idx + j * lane_tile) < hw
            if need_row_mask:
                row_idx = jax.lax.broadcasted_iota(
                    jnp.int32, (row_tile, lane_tile), 0)
                rmask = (row_idx + i * row_tile) < rows
                mask = rmask if mask is None else jnp.logical_and(mask, rmask)
            contrib = jnp.where(mask, contrib, jnp.float32(0.0))

        # Lane-reduce, accumulate into the resident per-row accumulator.
        rowsum_ref[...] += jnp.sum(contrib, axis=-1, keepdims=True)

    return kernel


def keypoints_cross_entropy_loss(out, target, weights, *,
                                 max_row_tile=256, max_lane_tile=4096):
    """Pallas TPU implementation of KeypointsCrossEntropyLoss.forward.

    out, target: (B, C, H, W); weights: (C,) (or any shape with C elements).
    Returns scalar float32 loss = -sum(target * log(clamp(out, eps)) * w_c) / B
    """
    B, C, H, W = out.shape
    rows = B * C
    HW = H * W

    # Stream in the source dtype; the kernel upcasts per-block.
    out2 = out.reshape(rows, HW)
    tgt2 = target.reshape(rows, HW)

    # Tile selection: lane axis up to 4096 (128-aligned); row axis up to 256
    # (8-aligned), shrunk so big problems expose >= 8 parallel row blocks
    # (v7x megacore) while keeping >= 64 rows per block.
    lane_tile = min(max_lane_tile, _round_up(HW, 128))
    row_tile = min(max_row_tile, _round_up(rows, 8))
    megacore_tile = _round_up(max(64, -(-rows // 8)), 8)
    row_tile = max(8, min(row_tile, megacore_tile))

    grid = (pl.cdiv(rows, row_tile), pl.cdiv(HW, lane_tile))

    bytes_accessed = rows * HW * (out2.dtype.itemsize + tgt2.dtype.itemsize) + rows * 4
    cost = pl.CostEstimate(flops=3 * rows * HW,
                           transcendentals=rows * HW,
                           bytes_accessed=bytes_accessed)

    row_sums = pl.pallas_call(
        _make_row_sum_kernel(rows, HW, row_tile, lane_tile),
        out_shape=jax.ShapeDtypeStruct((rows, 1), jnp.float32),
        grid_spec=pltpu.PrefetchScalarGridSpec(
            num_scalar_prefetch=0,
            grid=grid,
            in_specs=[
                pl.BlockSpec((row_tile, lane_tile), lambda i, j: (i, j)),
                pl.BlockSpec((row_tile, lane_tile), lambda i, j: (i, j)),
            ],
            out_specs=pl.BlockSpec((row_tile, 1), lambda i, j: (i, 0)),
        ),
        compiler_params=pltpu.CompilerParams(
            # Row blocks independent (megacore-shardable); H*W is the trailing
            # sequential reduction axis.
            dimension_semantics=("parallel", "arbitrary"),
            vmem_limit_bytes=48 << 20,
        ),
        cost_estimate=cost,
    )(out2, tgt2)

    # Apply per-channel weights with one tiny (B, C) @ (C,) matmul.
    w = weights.astype(jnp.float32).reshape(-1)
    per_bc = row_sums[:, 0].reshape(B, C)
    loss = -jnp.sum(per_bc @ w) / jnp.float32(B)
    return loss


def _reference_loss(out, target, weights):
    out_safe = jnp.maximum(out.astype(jnp.float32), EPS)
    log_pred = jnp.log(out_safe)
    w = weights.astype(jnp.float32).reshape(1, -1, 1, 1)
    loss = -jnp.sum(target.astype(jnp.float32) * log_pred * w)
    return loss / out.shape[0]


if __name__ == "__main__":
    key = jax.random.PRNGKey(0)

    # Primary small, tile-aligned case.
    B, C, H, W = 2, 4, 16, 16
    k1, k2, k3, k4 = jax.random.split(key, 4)
    out = jax.random.uniform(k1, (B, C, H, W), dtype=jnp.float32,
                             minval=0.0, maxval=1.0)
    target = jax.random.uniform(k2, (B, C, H, W), dtype=jnp.float32,
                                minval=0.0, maxval=1.0)
    weights = jnp.linspace(0.5, 2.0, C, dtype=jnp.float32)

    loss = jax.block_until_ready(keypoints_cross_entropy_loss(out, target, weights))
    ref = _reference_loss(out, target, weights)
    assert jnp.allclose(loss, ref, rtol=1e-5, atol=1e-5), (loss, ref)

    # Ragged (non-tile-aligned) case exercises the in-kernel edge masking.
    B2, C2, H2, W2 = 2, 3, 9, 11
    out_r = jax.random.uniform(k3, (B2, C2, H2, W2), dtype=jnp.float32,
                               minval=0.0, maxval=1.0)
    tgt_r = jax.random.uniform(k4, (B2, C2, H2, W2), dtype=jnp.float32,
                               minval=0.0, maxval=1.0)
    weights_r = jnp.linspace(0.25, 1.75, C2, dtype=jnp.float32)

    loss_r = jax.block_until_ready(
        keypoints_cross_entropy_loss(out_r, tgt_r, weights_r))
    ref_r = _reference_loss(out_r, tgt_r, weights_r)
    assert jnp.allclose(loss_r, ref_r, rtol=1e-5, atol=1e-5), (loss_r, ref_r)

    print("KERNEL_OK")
</pallas_src>

<mosaic_0001>
module attributes {stable_mosaic.version = 11 : i64} {
  func.func @kernel(%arg0: i32, %arg1: i32, %arg2: memref<8x256xf32, #tpu.memory_space<vmem>>, %arg3: memref<8x256xf32, #tpu.memory_space<vmem>>, %arg4: memref<8x1xf32, #tpu.memory_space<vmem>>) attributes {dimension_semantics = [#tpu.dimension_semantics<parallel>, #tpu.dimension_semantics<arbitrary>], iteration_bounds = array<i64: 1, 1>, scalar_prefetch = 0 : i64, scratch_operands = 0 : i64, tpu.core_type = #tpu.core_type<tc>, window_params = [{transform_indices = @transform_0, window_bounds = array<i64: 8, 256>}, {transform_indices = @transform_1, window_bounds = array<i64: 8, 256>}, {transform_indices = @transform_2, window_bounds = array<i64: 8, 1>}]} {
    %c0_i32 = arith.constant 0 : i32
    %0 = arith.cmpi eq, %arg1, %c0_i32 : i32
    %1 = arith.extui %0 : i1 to i32
    %c0_i32_0 = arith.constant 0 : i32
    %2 = arith.cmpi ne, %1, %c0_i32_0 : i32
    scf.if %2 {
      %cst_9 = arith.constant 0.000000e+00 : f32
      %14 = vector.broadcast %cst_9 : f32 to vector<8x1xf32>
      %c0_10 = arith.constant 0 : index
      %c0_11 = arith.constant 0 : index
      %15 = vector.load %arg4[%c0_10, %c0_11] : memref<8x1xf32, #tpu.memory_space<vmem>>, vector<8x1xf32>
      tpu.vector_store %arg4[%c0_10, %c0_11], %14 {strides = array<i32>} : memref<8x1xf32, #tpu.memory_space<vmem>>, vector<8x1xf32>,
    } else {
    }
    %c0 = arith.constant 0 : index
    %c0_1 = arith.constant 0 : index
    %3 = vector.load %arg2[%c0, %c0_1] : memref<8x256xf32, #tpu.memory_space<vmem>>, vector<8x256xf32>
    %c0_2 = arith.constant 0 : index
    %c0_3 = arith.constant 0 : index
    %4 = vector.load %arg3[%c0_2, %c0_3] : memref<8x256xf32, #tpu.memory_space<vmem>>, vector<8x256xf32>
    %cst = arith.constant 9.99999993E-9 : f32
    %5 = vector.broadcast %cst : f32 to vector<8x256xf32>
    %6 = arith.maximumf %3, %5 : vector<8x256xf32>
    %7 = math.log %6 : vector<8x256xf32>
    %8 = arith.mulf %4, %7 : vector<8x256xf32>
    %c0_4 = arith.constant 0 : index
    %c0_5 = arith.constant 0 : index
    %9 = vector.load %arg4[%c0_4, %c0_5] : memref<8x1xf32, #tpu.memory_space<vmem>>, vector<8x1xf32>
    %cst_6 = arith.constant dense<0.000000e+00> : vector<8xf32>
    %10 = vector.multi_reduction <add>, %8, %cst_6 [1] : vector<8x256xf32> to vector<8xf32>
    %11 = vector.shape_cast %10 : vector<8xf32> to vector<8x1xf32>
    %12 = arith.addf %9, %11 : vector<8x1xf32>
    %c0_7 = arith.constant 0 : index
    %c0_8 = arith.constant 0 : index
    %13 = vector.load %arg4[%c0_7, %c0_8] : memref<8x1xf32, #tpu.memory_space<vmem>>, vector<8x1xf32>
    tpu.vector_store %arg4[%c0_7, %c0_8], %12 {strides = array<i32>} : memref<8x1xf32, #tpu.memory_space<vmem>>, vector<8x1xf32>,
    return
  }
  func.func @transform_0(%arg0: i32, %arg1: i32) -> (i32, i32) {
    %c0_i32 = arith.constant 0 : i32
    return %arg0, %arg1 : i32, i32
  }
  func.func @transform_1(%arg0: i32, %arg1: i32) -> (i32, i32) {
    %c0_i32 = arith.constant 0 : i32
    return %arg0, %arg1 : i32, i32
  }
  func.func @transform_2(%arg0: i32, %arg1: i32) -> (i32, i32) {
    %c0_i32 = arith.constant 0 : i32
    %c0_i32_0 = arith.constant 0 : i32
    return %arg0, %c0_i32 : i32, i32
  }
}

</mosaic_0001>

<llo_original>
// kernel: tpu_custom_call.1
$region0: #{tpu_custom_call.1}
  #allocation0 [shape = 'u32[]', space=smem, size = 0x4, offset = 0x4, fixed_abs, tag = 'smem constant byte address 0x4 - core index']
  #allocation1 [shape = 'u32[144,128]{1,0:T(1,128)}', space=vmem, size = 0x12000, scoped, tag = 'internal scratch']
  %s0 = inlined_call_operand.hbm [shape: f32[8,256], index: 0, kind: input, shape index: {}]
  %s1 = inlined_call_operand.hbm [shape: f32[8,256], index: 1, kind: input, shape index: {}]
  %s2 = inlined_call_operand.vmem [shape: f32[8,1], index: 2, kind: output, shape index: {}]
  %s3 = sld [smem:[#allocation0]]
  $region30: #{tpu_custom_call.1} parent=0
    _
  %s5 = ssub.s32 1, %s3
  %s6 = scalar_select 0, %s5, %s3
  $region1: #{tpu_custom_call.1} parent=0
    #allocation2 [shape = 'u8[8192]{0}', space=vmem, size = 0x2000, scoped, tag = 'input window, operand 0, single buffered']
    #allocation3 [shape = 's32[1]{0}', space=sflag, size = 0x4, scoped, tag = 'scoped memory for tpu_custom_call.1']
    #allocation4 [shape = 'u8[8192]{0}', space=vmem, size = 0x2000, scoped, tag = 'input window, operand 1, single buffered']
    #allocation5 [shape = 's32[1]{0}', space=sflag, size = 0x4, scoped, tag = 'scoped memory for tpu_custom_call.1']
    %7 = vsyncpa [#allocation3], 0
    %8 = vsyncpa [#allocation5], 0
    // Predicated region
    $region2: #{tpu_custom_call.1} parent=1 // pred_check
      _
    $region3: #{tpu_custom_call.1} parent=1 // pred_check_branch
      %10 = sbr.rel (0) target = $region5
    $region4: #{tpu_custom_call.1} parent=1 // pred_region
      %s12 = ssub.s32 256, 256
      %13 = vsyncadd [#allocation3], %s12
      %s15 = sshll.u32 [#allocation2], 4
      %s16 = int_to_ptr.vmem [resolvable:$true] %s15
      %18 = dma.hbm_to_vmem [thread:$0]  %s0, 256, %s16, [#allocation3]
    $region5: #{tpu_custom_call.1} parent=1 // pred_fallthru
      _
    // Predicated region
    $region6: #{tpu_custom_call.1} parent=1 // pred_check
      _
    $region7: #{tpu_custom_call.1} parent=1 // pred_check_branch
      %20 = sbr.rel (0) target = $region9
    $region8: #{tpu_custom_call.1} parent=1 // pred_region
      %s22 = ssub.s32 256, 256
      %23 = vsyncadd [#allocation5], %s22
      %s25 = sshll.u32 [#allocation4], 4
      %s26 = int_to_ptr.vmem [resolvable:$true] %s25
      %28 = dma.hbm_to_vmem [thread:$0]  %s1, 256, %s26, [#allocation5]
    $region9: #{tpu_custom_call.1} parent=1 // pred_fallthru
      _
    // Predicated region
    $region10: #{tpu_custom_call.1} parent=1 // pred_check
      _
    $region11: #{tpu_custom_call.1} parent=1 // pred_check_branch
      %30 = sbr.rel (0) target = $region13
    $region12: #{tpu_custom_call.1} parent=1 // pred_region
      %31 = dma.done [#allocation3], 256
    $region13: #{tpu_custom_call.1} parent=1 // pred_fallthru
      _
    // Predicated region
    $region14: #{tpu_custom_call.1} parent=1 // pred_check
      _
    $region15: #{tpu_custom_call.1} parent=1 // pred_check_branch
      %33 = sbr.rel (0) target = $region17
    $region16: #{tpu_custom_call.1} parent=1 // pred_region
      %34 = dma.done [#allocation5], 256
    $region17: #{tpu_custom_call.1} parent=1 // pred_fallthru
      _
    %p35 = scmp.eq.s32.totalorder 0, 0
    // Predicated region
    $region18: #{tpu_custom_call.1} parent=1 // pred_check
      %p36 = pneg %p35
    $region19: #{tpu_custom_call.1} parent=1 // pred_check_branch
      %38 = sbr.rel (%p36) target = $region21
    $region20: #{tpu_custom_call.1} parent=1 // pred_region
      %vm39 = vcmask 7168
      %40 = vst.msk [vmem:[%s2] sm:$0xff] %vm39, 0.0
    $region21: #{tpu_custom_call.1} parent=1 // pred_fallthru
      _
    %v41 = vld [vmem:[#allocation2] sm:$0xff]
    %v42 = vld [vmem:[#allocation2 + $0x8] sm:$0xff]
    %v43 = vld [vmem:[#allocation4] sm:$0xff]
    %v44 = vld [vmem:[#allocation4 + $0x8] sm:$0xff]
    %v45 = vmax.f32 %v41, 1e-08
    %v46 = vmax.f32 %v42, 1e-08
    %v47 = vlog2.pop %v45
    %v48 = vmul.f32 %v47, 0.6931472
    %v49 = vlog2.pop %v46
    %v50 = vmul.f32 %v49, 0.6931472
    %v51 = vmul.f32 %v43, %v48
    %v52 = vmul.f32 %v44, %v50
    %v53 = vld [vmem:[%s2] sm:$0xff]
    %v54 = vadd.f32 %v51, %v52
    %55 = vadd.xlane.f32.xlu0 %v54
    %v56 = vpop.xlane.xlu0 %55
    %v57 = vadd.f32 %v53, %v56
    %vm58 = vcmask 7168
    %59 = vst.msk [vmem:[%s2] sm:$0xff] %vm58, %v57
    // Predicated region
    $region22: #{tpu_custom_call.1} parent=1 // pred_check
      _
    $region23: #{tpu_custom_call.1} parent=1 // pred_check_branch
      %61 = sbr.rel (0) target = $region25
    $region24: #{tpu_custom_call.1} parent=1 // pred_region
      _
    $region25: #{tpu_custom_call.1} parent=1 // pred_fallthru
      _
    // Predicated region
    $region26: #{tpu_custom_call.1} parent=1 // pred_check
      _
    $region27: #{tpu_custom_call.1} parent=1 // pred_check_branch
      %63 = sbr.rel (0) target = $region29
    $region28: #{tpu_custom_call.1} parent=1 // pred_region
      _
    $region29: #{tpu_custom_call.1} parent=1 // pred_fallthru
      _
    %64 = vsyncpa [#allocation3], 1
    %65 = vsyncpa [#allocation5], 1

</llo_original>
